<compile_context>
chip_gen: v7x
topology: tpu7x:2x2x1
jax: 0.10.0
libtpu: 0.0.40
codegen_flags: <defaults>
</compile_context>

<pallas_src>
import functools

import jax
import jax.numpy as jnp
from jax.experimental import pallas as pl
from jax.experimental.pallas import tpu as pltpu


def _round_up(x, m):
    return ((x + m - 1) // m) * m


def _soft_kl_kernel(x_ref, t_ref, out_ref, *, inv_tau, num_rows, block_rows,
                    mask_rows):
    x = x_ref[...].astype(jnp.float32) * inv_tau
    t = t_ref[...].astype(jnp.float32) * inv_tau

    if mask_rows:  # static: only emitted when B % TB != 0 (ragged last block)
        row = (jax.lax.broadcasted_iota(jnp.int32, (block_rows, 1), 0)
               + pl.program_id(0) * block_rows)
        valid = row < num_rows
        x = jnp.where(valid, x, 0.0)
        t = jnp.where(valid, t, 0.0)

    # max-stabilized shifted logits
    xs = x - jnp.max(x, axis=-1, keepdims=True)
    ts = t - jnp.max(t, axis=-1, keepdims=True)
    e_x = jnp.exp(xs)
    e_t = jnp.exp(ts)
    s_x = jnp.sum(e_x, axis=-1, keepdims=True)
    s_t = jnp.sum(e_t, axis=-1, keepdims=True)

    # KL per row = (1/s_t) * sum_j e_t_j*(ts_j - xs_j) + (log s_x - log s_t)
    w = jnp.sum(e_t * (ts - xs), axis=-1, keepdims=True)
    out_ref[...] = w / s_t + (jnp.log(s_x) - jnp.log(s_t))


def _hard_ce_kernel(x_ref, t_ref, out_ref, *, num_rows, block_rows, mask_rows):
    x = x_ref[...].astype(jnp.float32)
    t = t_ref[...]  # argmax selection in the teacher's native dtype
    tb, num_classes = x.shape

    if mask_rows:  # static: only emitted when B % TB != 0 (ragged last block)
        row = (jax.lax.broadcasted_iota(jnp.int32, (tb, 1), 0)
               + pl.program_id(0) * block_rows)
        valid = row < num_rows
        x = jnp.where(valid, x, 0.0)
        t = jnp.where(valid, t, jnp.zeros_like(t))

    col = jax.lax.broadcasted_iota(jnp.int32, (tb, num_classes), 1)
    # argmax(dim=1) of teacher with first-index tie-break (matches torch.argmax)
    t_max = jnp.max(t, axis=-1, keepdims=True)
    idx = jnp.min(jnp.where(t == t_max, col, num_classes), axis=-1,
                  keepdims=True)
    # gather x[label] without materializing a float one-hot
    x_at_label = jnp.sum(jnp.where(col == idx, x, 0.0), axis=-1, keepdims=True)

    # cross_entropy per row: logsumexp(x_i) - x_i[label_i]
    x_max = jnp.max(x, axis=-1, keepdims=True)
    lse = jnp.log(jnp.sum(jnp.exp(x - x_max), axis=-1, keepdims=True)) + x_max
    out_ref[...] = lse - x_at_label


def distillation_loss(outputs, teacher_outputs, *, distillation_type="soft",
                      tau=1.0, block_rows=None):
    assert distillation_type in ("soft", "hard")
    assert outputs.shape == teacher_outputs.shape and outputs.ndim == 2
    b, c = outputs.shape
    itemsize = jnp.dtype(outputs.dtype).itemsize

    # In-flight bytes per tile element:
    #   2 inputs x 2 pipeline buffers in the input dtype  +  ~6 full-tile f32
    #   temporaries (both kernels cast to f32 immediately).
    bytes_per_elem = 4 * itemsize + 6 * 4
    if block_rows is None:
        tb = (24 * 1024 * 1024) // max(1, c * bytes_per_elem)
        tb = max(8, min(1024, (tb // 8) * 8))
    else:
        tb = max(8, _round_up(block_rows, 8))
    tb = min(tb, _round_up(b, 8))

    grid = (pl.cdiv(b, tb),)
    mask_rows = (b % tb) != 0  # static: ragged last block carries garbage rows

    if distillation_type == "soft":
        kernel = functools.partial(
            _soft_kl_kernel, inv_tau=1.0 / float(tau),
            num_rows=b, block_rows=tb, mask_rows=mask_rows)
        scale = float(tau) * float(tau) / float(b * c)
    else:
        kernel = functools.partial(
            _hard_ce_kernel, num_rows=b, block_rows=tb, mask_rows=mask_rows)
        scale = 1.0 / float(b)

    # Explicit VMEM budget: in-flight tile bytes + 1 MiB headroom, floored at
    # the 32 MiB default and capped at 48 MiB for v7x's 64 MiB/TC physical VMEM.
    vmem_need = tb * c * bytes_per_elem + (1 << 20)
    vmem_limit = int(min(max(vmem_need, 32 << 20), 48 << 20))
    # TODO(synk): for extremely large C (tb already 8 and vmem_need > ~48 MiB)
    # the class axis should be blocked with a two-pass/online logsumexp; not
    # needed for typical distillation class counts.

    per_row = pl.pallas_call(
        kernel,
        out_shape=jax.ShapeDtypeStruct((b, 1), jnp.float32),
        grid=grid,
        in_specs=[
            pl.BlockSpec((tb, c), lambda i: (i, 0)),
            pl.BlockSpec((tb, c), lambda i: (i, 0)),
        ],
        out_specs=pl.BlockSpec((tb, 1), lambda i: (i, 0)),
        compiler_params=pltpu.CompilerParams(
            dimension_semantics=("parallel",),
            vmem_limit_bytes=vmem_limit),
    )(outputs, teacher_outputs)

    return jnp.sum(per_row) * scale


def _reference(outputs, teacher_outputs, distillation_type, tau):
    # pure-JAX reference of the PyTorch semantics (for sanity check)
    if distillation_type == "soft":
        lp = jax.nn.log_softmax(outputs / tau, axis=1)
        lq = jax.nn.log_softmax(teacher_outputs / tau, axis=1)
        return jnp.sum(jnp.exp(lq) * (lq - lp)) * (tau * tau) / outputs.size
    labels = jnp.argmax(teacher_outputs, axis=1)
    lp = jax.nn.log_softmax(outputs, axis=1)
    return -jnp.mean(jnp.take_along_axis(lp, labels[:, None], axis=1))


if __name__ == "__main__":
    key = jax.random.PRNGKey(0)
    tau = 2.0  # deterministic "__init__" parameters
    ok = True

    # case 1: small single-tile case (B aligned to the row tile)
    k1, k2, k3, k4 = jax.random.split(key, 4)
    out_a = jax.random.normal(k1, (8, 32), dtype=jnp.float32)
    tea_a = jax.random.normal(k2, (8, 32), dtype=jnp.float32)
    # case 2: non-tile-aligned batch, forced small tile -> multi-step grid with
    #         a ragged last block (exercises the in-kernel row masking)
    out_b = jax.random.normal(k3, (20, 160), dtype=jnp.float32)
    tea_b = jax.random.normal(k4, (20, 160), dtype=jnp.float32)

    cases = [(out_a, tea_a, None), (out_b, tea_b, 8)]
    for outputs, teacher_outputs, br in cases:
        for dist_type in ("soft", "hard"):
            got = jax.block_until_ready(
                distillation_loss(outputs, teacher_outputs,
                                  distillation_type=dist_type, tau=tau,
                                  block_rows=br))
            want = _reference(outputs, teacher_outputs, dist_type, tau)
            ok = ok and bool(jnp.allclose(got, want, rtol=1e-5, atol=1e-5))

    if ok:
        print("KERNEL_OK")
</pallas_src>

<mosaic_0001>
module attributes {stable_mosaic.version = 11 : i64} {
  func.func @_soft_kl_kernel(%arg0: i32, %arg1: memref<8x32xf32, #tpu.memory_space<vmem>>, %arg2: memref<8x32xf32, #tpu.memory_space<vmem>>, %arg3: memref<8x1xf32, #tpu.memory_space<vmem>>) attributes {dimension_semantics = [#tpu.dimension_semantics<parallel>], iteration_bounds = array<i64: 1>, scalar_prefetch = 0 : i64, scratch_operands = 0 : i64, tpu.core_type = #tpu.core_type<tc>, window_params = [{transform_indices = @transform_0, window_bounds = array<i64: 8, 32>}, {transform_indices = @transform_1, window_bounds = array<i64: 8, 32>}, {transform_indices = @transform_2, window_bounds = array<i64: 8, 1>}]} {
    %c0 = arith.constant 0 : index
    %c0_0 = arith.constant 0 : index
    %0 = vector.load %arg1[%c0, %c0_0] : memref<8x32xf32, #tpu.memory_space<vmem>>, vector<8x32xf32>
    %cst = arith.constant 5.000000e-01 : f32
    %1 = vector.broadcast %cst : f32 to vector<8x32xf32>
    %2 = arith.mulf %0, %1 : vector<8x32xf32>
    %c0_1 = arith.constant 0 : index
    %c0_2 = arith.constant 0 : index
    %3 = vector.load %arg2[%c0_1, %c0_2] : memref<8x32xf32, #tpu.memory_space<vmem>>, vector<8x32xf32>
    %cst_3 = arith.constant 5.000000e-01 : f32
    %4 = vector.broadcast %cst_3 : f32 to vector<8x32xf32>
    %5 = arith.mulf %3, %4 : vector<8x32xf32>
    %cst_4 = arith.constant dense<0xFF800000> : vector<8xf32>
    %6 = vector.multi_reduction <maximumf>, %2, %cst_4 [1] : vector<8x32xf32> to vector<8xf32>
    %7 = vector.shape_cast %6 : vector<8xf32> to vector<8x1xf32>
    %8 = vector.broadcast %7 : vector<8x1xf32> to vector<8x32xf32>
    %9 = arith.subf %2, %8 : vector<8x32xf32>
    %cst_5 = arith.constant dense<0xFF800000> : vector<8xf32>
    %10 = vector.multi_reduction <maximumf>, %5, %cst_5 [1] : vector<8x32xf32> to vector<8xf32>
    %11 = vector.shape_cast %10 : vector<8xf32> to vector<8x1xf32>
    %12 = vector.broadcast %11 : vector<8x1xf32> to vector<8x32xf32>
    %13 = arith.subf %5, %12 : vector<8x32xf32>
    %14 = math.exp %9 : vector<8x32xf32>
    %15 = math.exp %13 : vector<8x32xf32>
    %cst_6 = arith.constant dense<0.000000e+00> : vector<8xf32>
    %16 = vector.multi_reduction <add>, %14, %cst_6 [1] : vector<8x32xf32> to vector<8xf32>
    %17 = vector.shape_cast %16 : vector<8xf32> to vector<8x1xf32>
    %cst_7 = arith.constant dense<0.000000e+00> : vector<8xf32>
    %18 = vector.multi_reduction <add>, %15, %cst_7 [1] : vector<8x32xf32> to vector<8xf32>
    %19 = vector.shape_cast %18 : vector<8xf32> to vector<8x1xf32>
    %20 = arith.subf %13, %9 : vector<8x32xf32>
    %21 = arith.mulf %15, %20 : vector<8x32xf32>
    %cst_8 = arith.constant dense<0.000000e+00> : vector<8xf32>
    %22 = vector.multi_reduction <add>, %21, %cst_8 [1] : vector<8x32xf32> to vector<8xf32>
    %23 = vector.shape_cast %22 : vector<8xf32> to vector<8x1xf32>
    %24 = arith.divf %23, %19 : vector<8x1xf32>
    %25 = math.log %17 : vector<8x1xf32>
    %26 = math.log %19 : vector<8x1xf32>
    %27 = arith.subf %25, %26 : vector<8x1xf32>
    %28 = arith.addf %24, %27 : vector<8x1xf32>
    %c0_9 = arith.constant 0 : index
    %c0_10 = arith.constant 0 : index
    %29 = vector.load %arg3[%c0_9, %c0_10] : memref<8x1xf32, #tpu.memory_space<vmem>>, vector<8x1xf32>
    tpu.vector_store %arg3[%c0_9, %c0_10], %28 {strides = array<i32>} : memref<8x1xf32, #tpu.memory_space<vmem>>, vector<8x1xf32>,
    return
  }
  func.func @transform_0(%arg0: i32) -> (i32, i32) {
    %c0_i32 = arith.constant 0 : i32
    %c0_i32_0 = arith.constant 0 : i32
    return %arg0, %c0_i32 : i32, i32
  }
  func.func @transform_1(%arg0: i32) -> (i32, i32) {
    %c0_i32 = arith.constant 0 : i32
    %c0_i32_0 = arith.constant 0 : i32
    return %arg0, %c0_i32 : i32, i32
  }
  func.func @transform_2(%arg0: i32) -> (i32, i32) {
    %c0_i32 = arith.constant 0 : i32
    %c0_i32_0 = arith.constant 0 : i32
    return %arg0, %c0_i32 : i32, i32
  }
}

</mosaic_0001>

<llo_original>
// kernel: tpu_custom_call.1
$region0: #{tpu_custom_call.1}
  #allocation0 [shape = 'u32[]', space=smem, size = 0x4, offset = 0x4, fixed_abs, tag = 'smem constant byte address 0x4 - core index']
  #allocation1 [shape = 'u32[144,128]{1,0:T(1,128)}', space=vmem, size = 0x12000, scoped, tag = 'internal scratch']
  %s0 = inlined_call_operand.hbm [shape: f32[8,32], index: 0, kind: input, shape index: {}]
  %s1 = inlined_call_operand.hbm [shape: f32[8,32], index: 1, kind: input, shape index: {}]
  %s2 = inlined_call_operand.vmem [shape: f32[8,1], index: 2, kind: output, shape index: {}]
  %s3 = sld [smem:[#allocation0]]
  $region26: #{tpu_custom_call.1} parent=0
    _
  %s5 = ssub.s32 1, %s3
  %s6 = scalar_select 0, %s5, %s3
  $region1: #{tpu_custom_call.1} parent=0
    #allocation2 [shape = 'u8[4096]{0}', space=vmem, size = 0x1000, scoped, tag = 'input window, operand 0, single buffered']
    #allocation3 [shape = 's32[1]{0}', space=sflag, size = 0x4, scoped, tag = 'scoped memory for tpu_custom_call.1']
    #allocation4 [shape = 'u8[4096]{0}', space=vmem, size = 0x1000, scoped, tag = 'input window, operand 1, single buffered']
    #allocation5 [shape = 's32[1]{0}', space=sflag, size = 0x4, scoped, tag = 'scoped memory for tpu_custom_call.1']
    %7 = vsyncpa [#allocation3], 0
    %8 = vsyncpa [#allocation5], 0
    // Predicated region
    $region2: #{tpu_custom_call.1} parent=1 // pred_check
      _
    $region3: #{tpu_custom_call.1} parent=1 // pred_check_branch
      %10 = sbr.rel (0) target = $region5
    $region4: #{tpu_custom_call.1} parent=1 // pred_region
      %s12 = ssub.s32 128, 128
      %13 = vsyncadd [#allocation3], %s12
      %s15 = sshll.u32 [#allocation2], 4
      %s16 = int_to_ptr.vmem [resolvable:$true] %s15
      %18 = dma.hbm_to_vmem [thread:$0]  %s0, 128, %s16, [#allocation3]
    $region5: #{tpu_custom_call.1} parent=1 // pred_fallthru
      _
    // Predicated region
    $region6: #{tpu_custom_call.1} parent=1 // pred_check
      _
    $region7: #{tpu_custom_call.1} parent=1 // pred_check_branch
      %20 = sbr.rel (0) target = $region9
    $region8: #{tpu_custom_call.1} parent=1 // pred_region
      %s22 = ssub.s32 128, 128
      %23 = vsyncadd [#allocation5], %s22
      %s25 = sshll.u32 [#allocation4], 4
      %s26 = int_to_ptr.vmem [resolvable:$true] %s25
      %28 = dma.hbm_to_vmem [thread:$0]  %s1, 128, %s26, [#allocation5]
    $region9: #{tpu_custom_call.1} parent=1 // pred_fallthru
      _
    // Predicated region
    $region10: #{tpu_custom_call.1} parent=1 // pred_check
      _
    $region11: #{tpu_custom_call.1} parent=1 // pred_check_branch
      %30 = sbr.rel (0) target = $region13
    $region12: #{tpu_custom_call.1} parent=1 // pred_region
      %31 = dma.done [#allocation3], 128
    $region13: #{tpu_custom_call.1} parent=1 // pred_fallthru
      _
    // Predicated region
    $region14: #{tpu_custom_call.1} parent=1 // pred_check
      _
    $region15: #{tpu_custom_call.1} parent=1 // pred_check_branch
      %33 = sbr.rel (0) target = $region17
    $region16: #{tpu_custom_call.1} parent=1 // pred_region
      %34 = dma.done [#allocation5], 128
    $region17: #{tpu_custom_call.1} parent=1 // pred_fallthru
      _
    %v35 = vld [vmem:[#allocation2] sm:$0xff]
    %v36 = vmul.f32 %v35, 0.5
    %v37 = vld [vmem:[#allocation4] sm:$0xff]
    %v38 = vmul.f32 %v37, 0.5
    %vm39 = vcmask 261120
    %v40 = vsel %vm39, %v36, -inf
    %41 = vmax.xlane.f32.xlu0 %v40
    %v42 = vpop.xlane.xlu0 %41
    %v43 = vsub.f32 %v36, %v42
    %v44 = vsel %vm39, %v38, -inf
    %45 = vmax.xlane.f32.xlu0 %v44
    %v46 = vpop.xlane.xlu0 %45
    %v47 = vsub.f32 %v38, %v46
    %v48 = vmul.f32 %v43, 1.442695
    %v49 = vpow.pop %v48
    %v50 = vmul.f32 %v47, 1.442695
    %v51 = vpow.pop %v50
    %v52 = vsel %vm39, %v49, 0.0
    %53 = vadd.xlane.f32.xlu0 %v52
    %v54 = vpop.xlane.xlu0 %53
    %v55 = vsel %vm39, %v51, 0.0
    %56 = vadd.xlane.f32.xlu0 %v55
    %v57 = vpop.xlane.xlu0 %56
    %v58 = vsub.f32 %v47, %v43
    %v59 = vmul.f32 %v51, %v58
    %v60 = vsel %vm39, %v59, 0.0
    %61 = vadd.xlane.f32.xlu0 %v60
    %v62 = vpop.xlane.xlu0 %61
    %v63 = vrcp.pop %v57
    %v64 = vmul.f32 %v62, %v63
    %v65 = vlog2.pop %v54
    %v66 = vmul.f32 %v65, 0.6931472
    %v67 = vlog2.pop %v57
    %v68 = vmul.f32 %v67, 0.6931472
    %v69 = vsub.f32 %v66, %v68
    %v70 = vadd.f32 %v64, %v69
    %vm71 = vcmask 7168
    %72 = vst.msk [vmem:[%s2] sm:$0xff] %vm71, %v70
    // Predicated region
    $region18: #{tpu_custom_call.1} parent=1 // pred_check
      _
    $region19: #{tpu_custom_call.1} parent=1 // pred_check_branch
      %74 = sbr.rel (0) target = $region21
    $region20: #{tpu_custom_call.1} parent=1 // pred_region
      _
    $region21: #{tpu_custom_call.1} parent=1 // pred_fallthru
      _
    // Predicated region
    $region22: #{tpu_custom_call.1} parent=1 // pred_check
      _
    $region23: #{tpu_custom_call.1} parent=1 // pred_check_branch
      %76 = sbr.rel (0) target = $region25
    $region24: #{tpu_custom_call.1} parent=1 // pred_region
      _
    $region25: #{tpu_custom_call.1} parent=1 // pred_fallthru
      _
    %77 = vsyncpa [#allocation3], 1
    %78 = vsyncpa [#allocation5], 1

</llo_original>
